<compile_context>
chip_gen: v7x
topology: tpu7x:2x2x1
jax: 0.10.0
libtpu: 0.0.40
codegen_flags: <defaults>
</compile_context>

<pallas_src>
import functools

import jax
import jax.numpy as jnp
from jax.experimental import pallas as pl
from jax.experimental.pallas import tpu as pltpu


def _graph_kernel(x_ref, w_ref, b_ref, out_ref, *, bt, k):
    # x_ref  : (bt*k, D_in)  flattened batch chunk (flatten done in wrapper)
    # w_ref  : (D_in, C)     effective (weight-normed) linear weight, pre-transposed
    # b_ref  : (1, C)        linear bias
    # out_ref: (bt, k, k)    adjacency for this batch chunk
    x = x_ref[...]                                       # (bt*k, D_in) f32
    w = w_ref[...]                                       # (D_in, C)    f32
    b = b_ref[...]                                       # (1, C)       f32

    # Linear: one MXU matmul, f32 operands, f32 accumulate.
    h = jnp.dot(x, w, preferred_element_type=jnp.float32)   # (bt*k, C)
    # Bias + ReLU on the VPU, f32.
    h = jnp.maximum(h + b, 0.0)

    # Adjacency: single MXU matmul H @ H^T -> (bt*k, bt*k) Gram matrix
    # (valid because bt*k <= 128 by construction), then extract the bt
    # diagonal KxK blocks with static, 8-aligned slices.
    gram = jax.lax.dot_general(
        h, h,
        dimension_numbers=(((1,), (1,)), ((), ())),
        preferred_element_type=jnp.float32)              # (bt*k, bt*k)
    for bi in range(bt):                                 # bt is a small static constant
        out_ref[bi, :, :] = gram[bi * k:(bi + 1) * k,
                                 bi * k:(bi + 1) * k].astype(out_ref.dtype)


def graph_module_forward(mm_new, v_weight, g_weight, bias, *, block_b=None):
    """mm_new: (B, K, D_in); v_weight: (C, D_in); g_weight: (C,); bias: (C,)."""
    B, K, D_in = mm_new.shape
    C = v_weight.shape[0]

    # weight_norm (dim=0): w = g * v / ||v|| per output row, then pre-transpose
    # to (D_in, C) so the kernel sees a plain NN-layout matmul. Trace-time glue.
    v32 = v_weight.astype(jnp.float32)
    v_norm = jnp.sqrt(jnp.sum(v32 ** 2, axis=1, keepdims=True))
    w_eff_t = ((g_weight.astype(jnp.float32)[:, None] * v32) / v_norm).T   # (D_in, C)
    b2d = bias.astype(jnp.float32)[None, :]                                # (1, C)

    if block_b is None:
        # (a) Keep bt*K <= 128 so the adjacency collapses into one MXU matmul
        #     on every TPU generation (v5e MXU is 128-wide).
        cap_mxu = max(1, 128 // K)
        # (b) Keep the per-step working set (double-buffered in + out chunks)
        #     well under the v7x scoped-VMEM default (~32 MiB); budget 16 MiB.
        bytes_per_b = K * (D_in + K) * 4 * 2
        cap_vmem = max(1, (16 * 1024 * 1024) // bytes_per_b)
        block_b = max(1, min(B, cap_mxu, cap_vmem))
    # Keep the grid exact (no partial blocks): shrink to a divisor of B.
    while B % block_b:
        block_b -= 1

    # Trace-time flatten: contiguous (B*K, D_in) slab in HBM, no in-kernel reshape.
    x2d = mm_new.reshape(B * K, D_in)

    grid = (B // block_b,)
    kernel = functools.partial(_graph_kernel, bt=block_b, k=K)

    out = pl.pallas_call(
        kernel,
        out_shape=jax.ShapeDtypeStruct((B, K, K), jnp.float32),
        grid_spec=pltpu.PrefetchScalarGridSpec(
            num_scalar_prefetch=0,
            grid=grid,
            in_specs=[
                pl.BlockSpec((block_b * K, D_in), lambda i: (i, 0)),  # batch-chunk rows
                pl.BlockSpec((D_in, C), lambda i: (0, 0)),            # full weight, reused
                pl.BlockSpec((1, C), lambda i: (0, 0)),               # full bias, reused
            ],
            out_specs=pl.BlockSpec((block_b, K, K), lambda i: (i, 0, 0)),
        ),
        compiler_params=pltpu.CompilerParams(
            dimension_semantics=("parallel",),   # shards batch chunks across v7x TCs
        ),
    )(x2d, w_eff_t, b2d)
    return out


def _reference(mm_new, v_weight, g_weight, bias):
    # Pure-JAX reference of the same math (for correctness check).
    v_norm = jnp.sqrt(jnp.sum(v_weight ** 2, axis=1, keepdims=True))
    w_eff = g_weight[:, None] * v_weight / v_norm
    h = jnp.einsum("bkd,cd->bkc", mm_new, w_eff) + bias[None, None, :]
    h = jnp.maximum(h, 0.0)
    return jnp.einsum("bkc,bjc->bkj", h, h)


if __name__ == "__main__":
    # Shapes consistent with the module's forward:
    #   in_feature_dim = 32, combined_feature_dim = 32, K = 8, batch = 2
    B, K, D_in, C = 2, 8, 32, 32

    key = jax.random.PRNGKey(0)
    k1, k2, k3, k4 = jax.random.split(key, 4)

    mm_new = jax.random.normal(k1, (B, K, D_in), dtype=jnp.float32)
    v_weight = jax.random.normal(k2, (C, D_in), dtype=jnp.float32) * 0.1
    g_weight = 1.0 + 0.01 * jax.random.normal(k3, (C,), dtype=jnp.float32)
    bias = 0.01 * jax.random.normal(k4, (C,), dtype=jnp.float32)

    ref = _reference(mm_new, v_weight, g_weight, bias)

    adjacency = graph_module_forward(mm_new, v_weight, g_weight, bias)
    adjacency = jax.block_until_ready(adjacency)
    assert adjacency.shape == (B, K, K)
    assert jnp.allclose(adjacency, ref, atol=1e-4, rtol=1e-4), "mismatch vs reference"

    print("KERNEL_OK")
</pallas_src>

<mosaic_0001>
module attributes {stable_mosaic.version = 11 : i64} {
  func.func @_graph_kernel(%arg0: i32, %arg1: memref<16x32xf32, #tpu.memory_space<vmem>>, %arg2: memref<32x32xf32, #tpu.memory_space<vmem>>, %arg3: memref<1x32xf32, #tpu.memory_space<vmem>>, %arg4: memref<2x8x8xf32, #tpu.memory_space<vmem>>) attributes {dimension_semantics = [#tpu.dimension_semantics<parallel>], iteration_bounds = array<i64: 1>, scalar_prefetch = 0 : i64, scratch_operands = 0 : i64, tpu.core_type = #tpu.core_type<tc>, window_params = [{transform_indices = @transform_0, window_bounds = array<i64: 16, 32>}, {pipeline_mode = #tpu.pipeline_mode<synchronous>, transform_indices = @transform_1, window_bounds = array<i64: 32, 32>}, {pipeline_mode = #tpu.pipeline_mode<synchronous>, transform_indices = @transform_2, window_bounds = array<i64: 1, 32>}, {transform_indices = @transform_3, window_bounds = array<i64: 2, 8, 8>}]} {
    %c0 = arith.constant 0 : index
    %c0_0 = arith.constant 0 : index
    %0 = vector.load %arg1[%c0, %c0_0] : memref<16x32xf32, #tpu.memory_space<vmem>>, vector<16x32xf32>
    %c0_1 = arith.constant 0 : index
    %c0_2 = arith.constant 0 : index
    %1 = vector.load %arg2[%c0_1, %c0_2] : memref<32x32xf32, #tpu.memory_space<vmem>>, vector<32x32xf32>
    %c0_3 = arith.constant 0 : index
    %c0_4 = arith.constant 0 : index
    %2 = vector.load %arg3[%c0_3, %c0_4] : memref<1x32xf32, #tpu.memory_space<vmem>>, vector<1x32xf32>
    %cst = arith.constant dense<0.000000e+00> : vector<16x32xf32>
    %3 = tpu.matmul %0, %1, %cst {dimension_numbers = #tpu.dot_dimension_numbers<[1], [0], [0], [1], [0, 0, 1, 1], [], []>} : vector<16x32xf32>, vector<32x32xf32>, vector<16x32xf32> -> vector<16x32xf32>
    %4 = vector.broadcast %2 : vector<1x32xf32> to vector<16x32xf32>
    %5 = arith.addf %3, %4 : vector<16x32xf32>
    %cst_5 = arith.constant 0.000000e+00 : f32
    %6 = vector.broadcast %cst_5 : f32 to vector<16x32xf32>
    %7 = arith.maximumf %5, %6 : vector<16x32xf32>
    %cst_6 = arith.constant dense<0.000000e+00> : vector<16x16xf32>
    %8 = tpu.matmul %7, %7, %cst_6 {dimension_numbers = #tpu.dot_dimension_numbers<[1], [1], [0], [0], [0, 0, 1, 0], [], []>} : vector<16x32xf32>, vector<16x32xf32>, vector<16x16xf32> -> vector<16x16xf32>
    %9 = vector.extract_strided_slice %8 {offsets = [0, 0], sizes = [8, 8], strides = [1, 1]} : vector<16x16xf32> to vector<8x8xf32>
    %c0_7 = arith.constant 0 : index
    %c0_8 = arith.constant 0 : index
    %c0_9 = arith.constant 0 : index
    %10 = vector.load %arg4[%c0_7, %c0_8, %c0_9] : memref<2x8x8xf32, #tpu.memory_space<vmem>>, vector<1x8x8xf32>
    %11 = vector.shape_cast %10 : vector<1x8x8xf32> to vector<8x8xf32>
    %12 = vector.shape_cast %9 : vector<8x8xf32> to vector<1x8x8xf32>
    tpu.vector_store %arg4[%c0_7, %c0_8, %c0_9], %12 {strides = array<i32>} : memref<2x8x8xf32, #tpu.memory_space<vmem>>, vector<1x8x8xf32>,
    %13 = vector.extract_strided_slice %8 {offsets = [8, 8], sizes = [8, 8], strides = [1, 1]} : vector<16x16xf32> to vector<8x8xf32>
    %c1 = arith.constant 1 : index
    %c0_10 = arith.constant 0 : index
    %c0_11 = arith.constant 0 : index
    %14 = vector.load %arg4[%c1, %c0_10, %c0_11] : memref<2x8x8xf32, #tpu.memory_space<vmem>>, vector<1x8x8xf32>
    %15 = vector.shape_cast %14 : vector<1x8x8xf32> to vector<8x8xf32>
    %16 = vector.shape_cast %13 : vector<8x8xf32> to vector<1x8x8xf32>
    tpu.vector_store %arg4[%c1, %c0_10, %c0_11], %16 {strides = array<i32>} : memref<2x8x8xf32, #tpu.memory_space<vmem>>, vector<1x8x8xf32>,
    return
  }
  func.func @transform_0(%arg0: i32) -> (i32, i32) {
    %c0_i32 = arith.constant 0 : i32
    %c0_i32_0 = arith.constant 0 : i32
    return %arg0, %c0_i32 : i32, i32
  }
  func.func @transform_1(%arg0: i32) -> (i32, i32) {
    %c0_i32 = arith.constant 0 : i32
    %c0_i32_0 = arith.constant 0 : i32
    %c0_i32_1 = arith.constant 0 : i32
    return %c0_i32, %c0_i32_0 : i32, i32
  }
  func.func @transform_2(%arg0: i32) -> (i32, i32) {
    %c0_i32 = arith.constant 0 : i32
    %c0_i32_0 = arith.constant 0 : i32
    %c0_i32_1 = arith.constant 0 : i32
    return %c0_i32, %c0_i32_0 : i32, i32
  }
  func.func @transform_3(%arg0: i32) -> (i32, i32, i32) {
    %c0_i32 = arith.constant 0 : i32
    %c0_i32_0 = arith.constant 0 : i32
    %c0_i32_1 = arith.constant 0 : i32
    return %arg0, %c0_i32, %c0_i32_0 : i32, i32, i32
  }
}

</mosaic_0001>

<llo_original>
// kernel: tpu_custom_call.1
$region0: #{tpu_custom_call.1}
  #allocation0 [shape = 'u32[]', space=smem, size = 0x4, offset = 0x4, fixed_abs, tag = 'smem constant byte address 0x4 - core index']
  #allocation1 [shape = 'u32[144,128]{1,0:T(1,128)}', space=vmem, size = 0x12000, scoped, tag = 'internal scratch']
  %s0 = inlined_call_operand.hbm [shape: f32[16,32], index: 0, kind: input, shape index: {}]
  %s1 = inlined_call_operand.hbm [shape: f32[32,32], index: 1, kind: input, shape index: {}]
  %s2 = inlined_call_operand.vmem [shape: f32[1,32], index: 2, kind: input, shape index: {}]
  %s3 = inlined_call_operand.hbm [shape: f32[2,8,8], index: 3, kind: output, shape index: {}]
  %s4 = sld [smem:[#allocation0]]
  $region30: #{tpu_custom_call.1} parent=0
    _
  %s6 = ssub.s32 1, %s4
  %s7 = scalar_select 0, %s6, %s4
  $region1: #{tpu_custom_call.1} parent=0
    #allocation2 [shape = 'u8[8192]{0}', space=vmem, size = 0x2000, scoped, tag = 'input window, operand 0, single buffered']
    #allocation3 [shape = 's32[1]{0}', space=sflag, size = 0x4, scoped, tag = 'scoped memory for tpu_custom_call.1']
    #allocation4 [shape = 's32[1]{0}', space=sflag, size = 0x4, scoped, tag = 'scoped memory for tpu_custom_call.1']
    #allocation5 [shape = 'u8[16384]{0}', space=vmem, size = 0x4000, scoped, tag = 'input window, operand 1, single buffered']
    #allocation6 [shape = 's32[1]{0}', space=sflag, size = 0x4, scoped, tag = 'scoped memory for tpu_custom_call.1']
    #allocation7 [shape = 'u8[8192]{0}', space=vmem, size = 0x2000, scoped, tag = 'output window, operand 0, single buffered']
    %8 = vsyncpa [#allocation3], 0
    %9 = vsyncpa [#allocation6], 0
    %10 = vsyncpa [#allocation4], 0
    // Predicated region
    $region2: #{tpu_custom_call.1} parent=1 // pred_check
      _
    $region3: #{tpu_custom_call.1} parent=1 // pred_check_branch
      %12 = sbr.rel (0) target = $region5
    $region4: #{tpu_custom_call.1} parent=1 // pred_region
      %s14 = ssub.s32 256, 256
      %15 = vsyncadd [#allocation3], %s14
      %s16 = sshll.u32 [#allocation2], 4
      %s17 = int_to_ptr.vmem [resolvable:$true] %s16
      %22 = dma.hbm_to_vmem [thread:$0]  %s0, 256, %s17, [#allocation3], 128, 128, 8
    $region5: #{tpu_custom_call.1} parent=1 // pred_fallthru
      _
    // Predicated region
    $region6: #{tpu_custom_call.1} parent=1 // pred_check
      _
    $region7: #{tpu_custom_call.1} parent=1 // pred_check_branch
      %24 = sbr.rel (0) target = $region9
    $region8: #{tpu_custom_call.1} parent=1 // pred_region
      %s26 = ssub.s32 512, 512
      %27 = vsyncadd [#allocation6], %s26
      %s28 = sshll.u32 [#allocation5], 4
      %s29 = int_to_ptr.vmem [resolvable:$true] %s28
      %34 = dma.hbm_to_vmem [thread:$0]  %s1, 512, %s29, [#allocation6], 128, 128, 8
    $region9: #{tpu_custom_call.1} parent=1 // pred_fallthru
      _
    // Predicated region
    $region10: #{tpu_custom_call.1} parent=1 // pred_check
      _
    $region11: #{tpu_custom_call.1} parent=1 // pred_check_branch
      %36 = sbr.rel (0) target = $region13
    $region12: #{tpu_custom_call.1} parent=1 // pred_region
      _
    $region13: #{tpu_custom_call.1} parent=1 // pred_fallthru
      _
    // Predicated region
    $region14: #{tpu_custom_call.1} parent=1 // pred_check
      _
    $region15: #{tpu_custom_call.1} parent=1 // pred_check_branch
      %38 = sbr.rel (0) target = $region17
    $region16: #{tpu_custom_call.1} parent=1 // pred_region
      %39 = dma.done [#allocation3], 256
    $region17: #{tpu_custom_call.1} parent=1 // pred_fallthru
      _
    // Predicated region
    $region18: #{tpu_custom_call.1} parent=1 // pred_check
      _
    $region19: #{tpu_custom_call.1} parent=1 // pred_check_branch
      %41 = sbr.rel (0) target = $region21
    $region20: #{tpu_custom_call.1} parent=1 // pred_region
      %42 = dma.done [#allocation6], 512
    $region21: #{tpu_custom_call.1} parent=1 // pred_fallthru
      _
    %v43 = vld [vmem:[#allocation2] sm:$0xff]
    %v44 = vld [vmem:[#allocation2 + $0x8] sm:$0xff]
    %v45 = vld [vmem:[#allocation5] sm:$0xff]
    %v46 = vld [vmem:[#allocation5 + $0x8] sm:$0xff]
    %v47 = vld [vmem:[#allocation5 + $0x10] sm:$0xff]
    %v48 = vld [vmem:[#allocation5 + $0x18] sm:$0xff]
    %v49 = vld [vmem:[%s2] sm:$0x1]
    %v51 = vlaneseq
    %v52 = vshrl.u32 %v51, 7
    %v53 = vsub.s32 0, %v52
    %v54 = vrot.slane %v49, %v53
    %vm56 = vcmask 261120
    %v58 = vsel %vm56, %v43, 0
    %v61 = vsel %vm56, %v44, 0
    %63 = vmatprep.subr.mxu0 0.0
    %64 = vmatpush1.msra.mxu0 %v45
    %65 = vmatprep.subr.mxu0 0.0
    %66 = vmatpush1.msra.mxu0 %v46
    %67 = vmatprep.subr.mxu0 0.0
    %68 = vmatpush1.msra.mxu0 %v47
    %69 = vmatprep.subr.mxu0 0.0
    %70 = vmatpush1.msra.mxu0 %v48
    %71 = vmatprep.subr.mxu0 0.0
    %72 = vmatpush1.msra.mxu0 0.0
    %73 = vmatprep.subr.mxu0 0.0
    %74 = vmatpush1.msra.mxu0 0.0
    %75 = vmatprep.subr.mxu0 0.0
    %76 = vmatpush1.msra.mxu0 0.0
    %77 = vmatprep.subr.mxu0 0.0
    %78 = vmatpush1.msra.mxu0 0.0
    %79 = vmatprep.subr.mxu0 0.0
    %80 = vmatpush1.msra.mxu0 0.0
    %81 = vmatprep.subr.mxu0 0.0
    %82 = vmatpush1.msra.mxu0 0.0
    %83 = vmatprep.subr.mxu0 0.0
    %84 = vmatpush1.msra.mxu0 0.0
    %85 = vmatprep.subr.mxu0 0.0
    %86 = vmatpush1.msra.mxu0 0.0
    %87 = vmatprep.subr.mxu0 0.0
    %88 = vmatpush1.msra.mxu0 0.0
    %89 = vmatprep.subr.mxu0 0.0
    %90 = vmatpush1.msra.mxu0 0.0
    %91 = vmatprep.subr.mxu0 0.0
    %92 = vmatpush1.msra.mxu0 0.0
    %93 = vmatprep.subr.mxu0 0.0
    %94 = vmatpush1.msra.mxu0 0.0
    %95 = vmatprep.subr.mxu0 0.0
    %96 = vmatpush1.msra.mxu0 0.0
    %97 = vmatprep.subr.mxu0 0.0
    %98 = vmatpush1.msra.mxu0 0.0
    %99 = vmatprep.subr.mxu0 0.0
    %100 = vmatpush1.msra.mxu0 0.0
    %101 = vmatprep.subr.mxu0 0.0
    %102 = vmatpush1.msra.mxu0 0.0
    %103 = vmatprep.subr.mxu0 0.0
    %104 = vmatpush1.msra.mxu0 0.0
    %105 = vmatprep.subr.mxu0 0.0
    %106 = vmatpush1.msra.mxu0 0.0
    %107 = vmatprep.subr.mxu0 0.0
    %108 = vmatpush1.msra.mxu0 0.0
    %109 = vmatprep.subr.mxu0 0.0
    %110 = vmatpush1.msra.mxu0 0.0
    %111 = vmatprep.subr.mxu0 0.0
    %112 = vmatpush1.msra.mxu0 0.0
    %113 = vmatprep.subr.mxu0 0.0
    %114 = vmatpush1.msra.mxu0 0.0
    %115 = vmatprep.subr.mxu0 0.0
    %116 = vmatpush1.msra.mxu0 0.0
    %117 = vmatprep.subr.mxu0 0.0
    %118 = vmatpush1.msra.mxu0 0.0
    %119 = vmatprep.subr.mxu0 0.0
    %120 = vmatpush1.msra.mxu0 0.0
    %121 = vmatprep.subr.mxu0 0.0
    %122 = vmatpush1.msra.mxu0 0.0
    %123 = vmatprep.subr.mxu0 0.0
    %124 = vmatpush1.msra.mxu0 0.0
    %125 = vmatprep.subr.mxu0 0.0
    %126 = vmatpush1.msra.mxu0 0.0
    %127 = vmatprep.mubr.f32.mxu0 0.0
    %128 = vmatmul.mubr.f32.gmra.mrb[0].mxu0 %v58
    %v129 = vpop.f32.mrb[0].mxu0
    %v130 = vadd.f32 %v54, %v129
    %v131 = vpop.f32.mrb[0].mxu0
    %132 = vmatprep.mubr.f32.mxu0 0.0
    %133 = vmatmul.mubr.f32.gmra.mrb[0].mxu0 %v61
    %v134 = vpop.f32.mrb[0].mxu0
    %v135 = vadd.f32 %v54, %v134
    %v136 = vpop.f32.mrb[0].mxu0
    %137 = vdwg.mxu0
    %v138 = vmax.f32 %v130, 0.0
    %v139 = vmax.f32 %v135, 0.0
    %v141 = vsel %vm56, %v138, 0
    %v144 = vsel %vm56, %v139, 0
    %146 = vmatprep.subr.mxu0 0.0
    %147 = vmatpush1.xpose.msra.mxu0 %v141
    %148 = vmatprep.subr.mxu0 0.0
    %149 = vmatpush1.xpose.msra.mxu0 %v144
    %150 = vmatprep.subr.mxu0 0.0
    %151 = vmatpush1.xpose.msra.mxu0 0.0
    %152 = vmatprep.subr.mxu0 0.0
    %153 = vmatpush1.xpose.msra.mxu0 0.0
    %154 = vmatprep.subr.mxu0 0.0
    %155 = vmatpush1.xpose.msra.mxu0 0.0
    %156 = vmatprep.subr.mxu0 0.0
    %157 = vmatpush1.xpose.msra.mxu0 0.0
    %158 = vmatprep.subr.mxu0 0.0
    %159 = vmatpush1.xpose.msra.mxu0 0.0
    %160 = vmatprep.subr.mxu0 0.0
    %161 = vmatpush1.xpose.msra.mxu0 0.0
    %162 = vmatprep.subr.mxu0 0.0
    %163 = vmatpush1.xpose.msra.mxu0 0.0
    %164 = vmatprep.subr.mxu0 0.0
    %165 = vmatpush1.xpose.msra.mxu0 0.0
    %166 = vmatprep.subr.mxu0 0.0
    %167 = vmatpush1.xpose.msra.mxu0 0.0
    %168 = vmatprep.subr.mxu0 0.0
    %169 = vmatpush1.xpose.msra.mxu0 0.0
    %170 = vmatprep.subr.mxu0 0.0
    %171 = vmatpush1.xpose.msra.mxu0 0.0
    %172 = vmatprep.subr.mxu0 0.0
    %173 = vmatpush1.xpose.msra.mxu0 0.0
    %174 = vmatprep.subr.mxu0 0.0
    %175 = vmatpush1.xpose.msra.mxu0 0.0
    %176 = vmatprep.subr.mxu0 0.0
    %177 = vmatpush1.xpose.msra.mxu0 0.0
    %178 = vmatprep.subr.mxu0 0.0
    %179 = vmatpush1.xpose.msra.mxu0 0.0
    %180 = vmatprep.subr.mxu0 0.0
    %181 = vmatpush1.xpose.msra.mxu0 0.0
    %182 = vmatprep.subr.mxu0 0.0
    %183 = vmatpush1.xpose.msra.mxu0 0.0
    %184 = vmatprep.subr.mxu0 0.0
    %185 = vmatpush1.xpose.msra.mxu0 0.0
    %186 = vmatprep.subr.mxu0 0.0
    %187 = vmatpush1.xpose.msra.mxu0 0.0
    %188 = vmatprep.subr.mxu0 0.0
    %189 = vmatpush1.xpose.msra.mxu0 0.0
    %190 = vmatprep.subr.mxu0 0.0
    %191 = vmatpush1.xpose.msra.mxu0 0.0
    %192 = vmatprep.subr.mxu0 0.0
    %193 = vmatpush1.xpose.msra.mxu0 0.0
    %194 = vmatprep.subr.mxu0 0.0
    %195 = vmatpush1.xpose.msra.mxu0 0.0
    %196 = vmatprep.subr.mxu0 0.0
    %197 = vmatpush1.xpose.msra.mxu0 0.0
    %198 = vmatprep.subr.mxu0 0.0
    %199 = vmatpush1.xpose.msra.mxu0 0.0
    %200 = vmatprep.subr.mxu0 0.0
    %201 = vmatpush1.xpose.msra.mxu0 0.0
    %202 = vmatprep.subr.mxu0 0.0
    %203 = vmatpush1.xpose.msra.mxu0 0.0
    %204 = vmatprep.subr.mxu0 0.0
    %205 = vmatpush1.xpose.msra.mxu0 0.0
    %206 = vmatprep.subr.mxu0 0.0
    %207 = vmatpush1.xpose.msra.mxu0 0.0
    %208 = vmatprep.subr.mxu0 0.0
    %209 = vmatpush1.xpose.msra.mxu0 0.0
    %210 = vmatprep.mubr.f32.mxu0 0.0
    %211 = vmatmul.mubr.f32.gmra.mrb[0].mxu0 %v141
    %v212 = vpop.f32.mrb[0].mxu0
    %v213 = vadd.f32 0.0, %v212
    %v214 = vpop.f32.mrb[0].mxu0
    %215 = vmatprep.mubr.f32.mxu0 0.0
    %216 = vmatmul.mubr.f32.gmra.mrb[0].mxu0 %v144
    %v217 = vpop.f32.mrb[0].mxu0
    %v218 = vadd.f32 0.0, %v217
    %v219 = vpop.f32.mrb[0].mxu0
    %220 = vdwg.mxu0
    %vm221 = vcmask 64512
    %222 = vst.msk [vmem:[#allocation7] sm:$0xff] %vm221, %v213
    %224 = vrot.lane.b32.xlu0 %v218, 120
    %v225 = vpop.permute.xlu0 %224
    %s227 = scalar_lea.vmem [#allocation7], 8
    %228 = vst.msk [vmem:[%s227] sm:$0xff] %vm221, %v225
    // Predicated region
    $region22: #{tpu_custom_call.1} parent=1 // pred_check
      _
    $region23: #{tpu_custom_call.1} parent=1 // pred_check_branch
      %230 = sbr.rel (0) target = $region25
    $region24: #{tpu_custom_call.1} parent=1 // pred_region
      %s232 = ssub.s32 256, 256
      %233 = vsyncadd [#allocation4], %s232
      %s234 = sshll.u32 [#allocation7], 4
      %s235 = int_to_ptr.vmem [resolvable:$true] %s234
      %240 = dma.vmem_to_hbm [thread:$0]  %s235, 256, %s3, [#allocation4], 128, 128, 8
    $region25: #{tpu_custom_call.1} parent=1 // pred_fallthru
      _
    // Predicated region
    $region26: #{tpu_custom_call.1} parent=1 // pred_check
      _
    $region27: #{tpu_custom_call.1} parent=1 // pred_check_branch
      %242 = sbr.rel (0) target = $region29
    $region28: #{tpu_custom_call.1} parent=1 // pred_region
      %243 = dma.done [#allocation4], 256
    $region29: #{tpu_custom_call.1} parent=1 // pred_fallthru
      _
    %244 = vsyncpa [#allocation3], 1
    %245 = vsyncpa [#allocation6], 1
    %246 = vsyncpa [#allocation4], 1

</llo_original>
